<compile_context>
chip_gen: v5e
topology: v5e:2x2
jax: 0.10.0
libtpu: 0.0.40
codegen_flags: <defaults>
</compile_context>

<pallas_src>
import math

import jax
import jax.numpy as jnp
from jax.experimental import pallas as pl
from jax.experimental.pallas import tpu as pltpu


def _round_up(n: int, m: int) -> int:
    return ((n + m - 1) // m) * m


def _physical_vmem_bytes() -> int:
    """Per-TC physical VMEM; conservative 64 MiB (v7x) if the query is unavailable."""
    try:
        info = pltpu.get_tpu_info()
        v = getattr(info, "vmem_capacity_bytes", None)
        if v:
            return int(v)
    except Exception:
        pass
    return 64 * 1024 * 1024


def _projection_head_kernel(x_ref, w1_ref, b1_ref, w2_ref, b2_ref, o_ref):
    # x_ref : [TM, IN]    input activation tile, native dtype (e.g. f32)
    # w1_ref: [IN, HID]   linear_1 weight, pre-transposed, bf16
    # b1_ref: [1, HID]    linear_1 bias, f32
    # w2_ref: [HID, OUT]  linear_2 weight, pre-transposed, bf16
    # b2_ref: [1, OUT]    linear_2 bias, f32
    # o_ref : [TM, OUT]   output tile

    # In-kernel cast to the MXU input dtype (VPU op, hidden under the matmul).
    x = x_ref[...].astype(w1_ref.dtype)

    # Linear 1: [TM,IN] . [IN,HID] -> [TM,HID], f32 accumulation. No RHS relayout.
    h = jnp.dot(x, w1_ref[...], preferred_element_type=jnp.float32)
    h = jnp.maximum(h + b1_ref[...], 0.0)  # bias + ReLU in f32

    # Dropout: identity (eval mode).  TODO(synk): training-mode dropout not implemented.

    # Linear 2: [TM,HID] . [HID,OUT] -> [TM,OUT]
    y = jnp.dot(h.astype(w2_ref.dtype), w2_ref[...], preferred_element_type=jnp.float32)
    o_ref[...] = (y + b2_ref[...]).astype(o_ref.dtype)


def projection_head(x, w1, b1, w2, b2, *, dropout_p=0.0, tm=None,
                    compute_dtype=jnp.bfloat16, out_dtype=None):
    """ProjectionHead forward: Linear -> ReLU -> Dropout(eval: identity) -> Linear.

    x : [..., in_feat]
    w1: [hid_feat, in_feat]  (PyTorch nn.Linear layout)    b1: [hid_feat]
    w2: [out_feat, hid_feat]                               b2: [out_feat]
    dropout_p is accepted for interface parity; the kernel applies eval-mode
    (identity) dropout.  Returns [..., out_feat] (default dtype: x.dtype).
    """
    if x is None:
        return None

    *lead, in_feat = x.shape
    hid_feat = w1.shape[0]
    out_feat = w2.shape[0]
    out_dtype = x.dtype if out_dtype is None else out_dtype
    M = math.prod(lead) if lead else 1

    if M == 0:  # empty leading dim: nothing to compute
        return jnp.zeros((*lead, out_feat), dtype=out_dtype)

    phys_vmem = _physical_vmem_bytes()
    vmem_cap = int(phys_vmem * 0.75)  # v7x ~48 MiB, v5e/v6e ~96 MiB

    # Row tile: larger on 128-MiB-VMEM parts (v5e/v6e) for better HBM-roofline
    # utilisation; clamp to a 16-aligned row count for tiny inputs (bf16 packs two
    # rows per sublane).
    if tm is None:
        tm = 512 if phys_vmem >= (96 << 20) else 256
    tm = int(min(tm, _round_up(M, 16)))

    cdt = jnp.dtype(compute_dtype).itemsize
    xdt = jnp.dtype(x.dtype).itemsize
    odt = jnp.dtype(out_dtype).itemsize
    f32 = 4

    def footprint(rows):
        resident = ((in_feat * hid_feat + hid_feat * out_feat) * cdt
                    + (hid_feat + out_feat) * f32)
        streamed = 2 * rows * in_feat * xdt + 2 * rows * out_feat * odt
        scratch = (rows * in_feat * cdt            # in-kernel bf16 cast of x
                   + rows * hid_feat * (f32 + cdt)  # h (f32) + h (bf16)
                   + rows * out_feat * f32)         # y (f32)
        return resident + streamed + scratch

    # Shrink the row tile if the (generous, 2x) footprint would blow the VMEM cap.
    while tm >= 128 and 2 * footprint(tm) > vmem_cap:
        tm //= 2
    vmem_limit = int(min(max(2 * footprint(tm), 32 * 1024 * 1024), vmem_cap))

    # Operand prep.  Weight transpose/cast happens once per call here; in a real model
    # it would be done at parameter-load time.  x is NOT cast/padded on the host.
    x2 = x.reshape(M, in_feat)
    w1t = jnp.transpose(w1).astype(compute_dtype)   # [in_feat, hid_feat]
    w2t = jnp.transpose(w2).astype(compute_dtype)   # [hid_feat, out_feat]
    b1r = b1.astype(jnp.float32).reshape(1, hid_feat)
    b2r = b2.astype(jnp.float32).reshape(1, out_feat)

    cost = pl.CostEstimate(
        flops=2 * M * (in_feat * hid_feat + hid_feat * out_feat),
        transcendentals=0,
        bytes_accessed=(M * in_feat * xdt
                        + (in_feat * hid_feat + hid_feat * out_feat) * cdt
                        + (hid_feat + out_feat) * f32
                        + M * out_feat * odt),
    )

    grid = (pl.cdiv(M, tm),)
    const = dict(pipeline_mode=pl.Buffered(1))  # resident weights/biases: single buffer

    out = pl.pallas_call(
        _projection_head_kernel,
        out_shape=jax.ShapeDtypeStruct((M, out_feat), out_dtype),
        grid_spec=pltpu.PrefetchScalarGridSpec(
            num_scalar_prefetch=0,
            grid=grid,
            in_specs=[
                pl.BlockSpec((tm, in_feat), lambda i: (i, 0)),                   # x tile
                pl.BlockSpec((in_feat, hid_feat), lambda i: (0, 0), **const),    # W1^T
                pl.BlockSpec((1, hid_feat), lambda i: (0, 0), **const),          # b1
                pl.BlockSpec((hid_feat, out_feat), lambda i: (0, 0), **const),   # W2^T
                pl.BlockSpec((1, out_feat), lambda i: (0, 0), **const),          # b2
            ],
            out_specs=pl.BlockSpec((tm, out_feat), lambda i: (i, 0)),
        ),
        compiler_params=pltpu.CompilerParams(
            dimension_semantics=("parallel",),
            vmem_limit_bytes=vmem_limit,
        ),
        cost_estimate=cost,
    )(x2, w1t, b1r, w2t, b2r)

    return out.reshape(*lead, out_feat) if lead else out.reshape(out_feat)


def _reference(x, w1, b1, w2, b2):
    # Mirrors the kernel numerics: bf16 MXU inputs, f32 accumulation, eval-mode dropout.
    c = x.ndim - 1
    h = jax.lax.dot_general(
        x.astype(jnp.bfloat16), w1.astype(jnp.bfloat16),
        dimension_numbers=(((c,), (1,)), ((), ())),
        preferred_element_type=jnp.float32)
    h = jnp.maximum(h + b1.astype(jnp.float32), 0.0)
    y = jax.lax.dot_general(
        h.astype(jnp.bfloat16), w2.astype(jnp.bfloat16),
        dimension_numbers=(((c,), (1,)), ((), ())),
        preferred_element_type=jnp.float32)
    return (y + b2.astype(jnp.float32)).astype(x.dtype)


if __name__ == "__main__":
    B, S = 2, 8
    in_feat, hid_feat, out_feat = 128, 256, 128
    dropout = 0.0  # eval-mode / identity dropout

    key = jax.random.PRNGKey(0)
    kx, kw1, kb1, kw2, kb2, kx2 = jax.random.split(key, 6)

    x = jax.random.normal(kx, (B, S, in_feat), dtype=jnp.float32)

    # nn.Linear-style init
    bound1 = 1.0 / math.sqrt(in_feat)
    w1 = jax.random.uniform(kw1, (hid_feat, in_feat), minval=-bound1, maxval=bound1,
                            dtype=jnp.float32)
    b1 = jax.random.uniform(kb1, (hid_feat,), minval=-bound1, maxval=bound1,
                            dtype=jnp.float32)
    bound2 = 1.0 / math.sqrt(hid_feat)
    w2 = jax.random.uniform(kw2, (out_feat, hid_feat), minval=-bound2, maxval=bound2,
                            dtype=jnp.float32)
    b2 = jax.random.uniform(kb2, (out_feat,), minval=-bound2, maxval=bound2,
                            dtype=jnp.float32)

    # Main check.
    out = projection_head(x, w1, b1, w2, b2, dropout_p=dropout)
    out = jax.block_until_ready(out)
    ref = _reference(x, w1, b1, w2, b2)
    assert out.shape == (B, S, out_feat)
    assert jnp.allclose(out, ref, atol=2e-3, rtol=2e-3), (
        f"mismatch vs reference (max abs err {jnp.max(jnp.abs(out - ref))})")

    # Non-divisible row count exercises the cdiv / masked-partial-block path (no pad).
    x_odd = jax.random.normal(kx2, (3, 5, in_feat), dtype=jnp.float32)
    out_odd = jax.block_until_ready(projection_head(x_odd, w1, b1, w2, b2))
    ref_odd = _reference(x_odd, w1, b1, w2, b2)
    assert out_odd.shape == (3, 5, out_feat)
    assert jnp.allclose(out_odd, ref_odd, atol=2e-3, rtol=2e-3), "mismatch (padded path)"

    # Empty leading dim is handled host-side.
    out_empty = projection_head(jnp.zeros((0, in_feat), jnp.float32), w1, b1, w2, b2)
    assert out_empty.shape == (0, out_feat)

    print("KERNEL_OK")
</pallas_src>

<mosaic_0001>
module attributes {stable_mosaic.version = 11 : i64} {
  func.func @_projection_head_kernel(%arg0: i32, %arg1: memref<16x128xf32, #tpu.memory_space<vmem>>, %arg2: memref<128x256xbf16, #tpu.memory_space<vmem>>, %arg3: memref<1x256xf32, #tpu.memory_space<vmem>>, %arg4: memref<256x128xbf16, #tpu.memory_space<vmem>>, %arg5: memref<1x128xf32, #tpu.memory_space<vmem>>, %arg6: memref<16x128xf32, #tpu.memory_space<vmem>>) attributes {dimension_semantics = [#tpu.dimension_semantics<parallel>], iteration_bounds = array<i64: 1>, scalar_prefetch = 0 : i64, scratch_operands = 0 : i64, tpu.core_type = #tpu.core_type<tc>, window_params = [{transform_indices = @transform_0, window_bounds = array<i64: 16, 128>}, {pipeline_mode = #tpu.pipeline_mode<synchronous>, transform_indices = @transform_1, window_bounds = array<i64: 128, 256>}, {pipeline_mode = #tpu.pipeline_mode<synchronous>, transform_indices = @transform_2, window_bounds = array<i64: 1, 256>}, {pipeline_mode = #tpu.pipeline_mode<synchronous>, transform_indices = @transform_3, window_bounds = array<i64: 256, 128>}, {pipeline_mode = #tpu.pipeline_mode<synchronous>, transform_indices = @transform_4, window_bounds = array<i64: 1, 128>}, {transform_indices = @transform_5, window_bounds = array<i64: 16, 128>}]} {
    %c0 = arith.constant 0 : index
    %c0_0 = arith.constant 0 : index
    %0 = vector.load %arg1[%c0, %c0_0] : memref<16x128xf32, #tpu.memory_space<vmem>>, vector<16x128xf32>
    %1 = arith.truncf %0 : vector<16x128xf32> to vector<16x128xbf16>
    %c0_1 = arith.constant 0 : index
    %c0_2 = arith.constant 0 : index
    %2 = vector.load %arg2[%c0_1, %c0_2] : memref<128x256xbf16, #tpu.memory_space<vmem>>, vector<128x256xbf16>
    %cst = arith.constant dense<0.000000e+00> : vector<16x256xf32>
    %3 = tpu.matmul %1, %2, %cst {dimension_numbers = #tpu.dot_dimension_numbers<[1], [0], [0], [1], [0, 0, 1, 1], [], []>} : vector<16x128xbf16>, vector<128x256xbf16>, vector<16x256xf32> -> vector<16x256xf32>
    %c0_3 = arith.constant 0 : index
    %c0_4 = arith.constant 0 : index
    %4 = vector.load %arg3[%c0_3, %c0_4] : memref<1x256xf32, #tpu.memory_space<vmem>>, vector<1x256xf32>
    %5 = vector.broadcast %4 : vector<1x256xf32> to vector<16x256xf32>
    %6 = arith.addf %3, %5 : vector<16x256xf32>
    %cst_5 = arith.constant 0.000000e+00 : f32
    %7 = vector.broadcast %cst_5 : f32 to vector<16x256xf32>
    %8 = arith.maximumf %6, %7 : vector<16x256xf32>
    %9 = arith.truncf %8 : vector<16x256xf32> to vector<16x256xbf16>
    %c0_6 = arith.constant 0 : index
    %c0_7 = arith.constant 0 : index
    %10 = vector.load %arg4[%c0_6, %c0_7] : memref<256x128xbf16, #tpu.memory_space<vmem>>, vector<256x128xbf16>
    %cst_8 = arith.constant dense<0.000000e+00> : vector<16x128xf32>
    %11 = tpu.matmul %9, %10, %cst_8 {dimension_numbers = #tpu.dot_dimension_numbers<[1], [0], [0], [1], [0, 0, 1, 1], [], []>} : vector<16x256xbf16>, vector<256x128xbf16>, vector<16x128xf32> -> vector<16x128xf32>
    %c0_9 = arith.constant 0 : index
    %c0_10 = arith.constant 0 : index
    %12 = vector.load %arg5[%c0_9, %c0_10] : memref<1x128xf32, #tpu.memory_space<vmem>>, vector<1x128xf32>
    %13 = vector.broadcast %12 : vector<1x128xf32> to vector<16x128xf32>
    %14 = arith.addf %11, %13 : vector<16x128xf32>
    %c0_11 = arith.constant 0 : index
    %c0_12 = arith.constant 0 : index
    %15 = vector.load %arg6[%c0_11, %c0_12] : memref<16x128xf32, #tpu.memory_space<vmem>>, vector<16x128xf32>
    tpu.vector_store %arg6[%c0_11, %c0_12], %14 {strides = array<i32>} : memref<16x128xf32, #tpu.memory_space<vmem>>, vector<16x128xf32>,
    return
  }
  func.func @transform_0(%arg0: i32) -> (i32, i32) {
    %c0_i32 = arith.constant 0 : i32
    %c0_i32_0 = arith.constant 0 : i32
    return %arg0, %c0_i32 : i32, i32
  }
  func.func @transform_1(%arg0: i32) -> (i32, i32) {
    %c0_i32 = arith.constant 0 : i32
    %c0_i32_0 = arith.constant 0 : i32
    %c0_i32_1 = arith.constant 0 : i32
    return %c0_i32, %c0_i32_0 : i32, i32
  }
  func.func @transform_2(%arg0: i32) -> (i32, i32) {
    %c0_i32 = arith.constant 0 : i32
    %c0_i32_0 = arith.constant 0 : i32
    %c0_i32_1 = arith.constant 0 : i32
    return %c0_i32, %c0_i32_0 : i32, i32
  }
  func.func @transform_3(%arg0: i32) -> (i32, i32) {
    %c0_i32 = arith.constant 0 : i32
    %c0_i32_0 = arith.constant 0 : i32
    %c0_i32_1 = arith.constant 0 : i32
    return %c0_i32, %c0_i32_0 : i32, i32
  }
  func.func @transform_4(%arg0: i32) -> (i32, i32) {
    %c0_i32 = arith.constant 0 : i32
    %c0_i32_0 = arith.constant 0 : i32
    %c0_i32_1 = arith.constant 0 : i32
    return %c0_i32, %c0_i32_0 : i32, i32
  }
  func.func @transform_5(%arg0: i32) -> (i32, i32) {
    %c0_i32 = arith.constant 0 : i32
    %c0_i32_0 = arith.constant 0 : i32
    return %arg0, %c0_i32 : i32, i32
  }
}

</mosaic_0001>

<llo_original>
// kernel: tpu_custom_call.1
$region0: #{tpu_custom_call.1}
  #allocation0 [shape = 'u32[]', space=smem, size = 0x4, offset = 0x4, fixed_abs, tag = 'smem constant byte address 0x4 - core index']
  #allocation1 [shape = 'u32[72,128]{1,0:T(1,128)}', space=vmem, size = 0x9000, scoped, tag = 'internal scratch']
  %s0 = inlined_call_operand.hbm [shape: f32[16,128], index: 0, kind: input, shape index: {}]
  %s1 = inlined_call_operand.hbm [shape: bf16[128,256], index: 1, kind: input, shape index: {}]
  %s2 = inlined_call_operand.hbm [shape: f32[1,256], index: 2, kind: input, shape index: {}]
  %s3 = inlined_call_operand.hbm [shape: bf16[256,128], index: 3, kind: input, shape index: {}]
  %s4 = inlined_call_operand.vmem [shape: f32[1,128], index: 4, kind: input, shape index: {}]
  %s5 = inlined_call_operand.hbm [shape: f32[16,128], index: 5, kind: output, shape index: {}]
  %s6 = sld [smem:[#allocation0]]
  $region46: #{tpu_custom_call.1} parent=0
    _
  %s8 = ssub.s32 1, %s6
  %s9 = scalar_select 0, %s8, %s6
  $region1: #{tpu_custom_call.1} parent=0
    #allocation2 [shape = 'u8[8192]{0}', space=vmem, size = 0x2000, scoped, tag = 'input window, operand 0, single buffered']
    #allocation3 [shape = 's32[1]{0}', space=sflag, size = 0x4, scoped, tag = 'scoped memory for tpu_custom_call.1']
    #allocation4 [shape = 's32[1]{0}', space=sflag, size = 0x4, scoped, tag = 'scoped memory for tpu_custom_call.1']
    #allocation5 [shape = 'u8[65536]{0}', space=vmem, size = 0x10000, scoped, tag = 'input window, operand 1, single buffered']
    #allocation6 [shape = 's32[1]{0}', space=sflag, size = 0x4, scoped, tag = 'scoped memory for tpu_custom_call.1']
    #allocation7 [shape = 'u8[1024]{0}', space=vmem, size = 0x400, scoped, tag = 'input window, operand 2, single buffered']
    #allocation8 [shape = 'u8[65536]{0}', space=vmem, size = 0x10000, scoped, tag = 'input window, operand 3, single buffered']
    #allocation9 [shape = 's32[1]{0}', space=sflag, size = 0x4, scoped, tag = 'scoped memory for tpu_custom_call.1']
    #allocation10 [shape = 'u8[8192]{0}', space=vmem, size = 0x2000, scoped, tag = 'output window, operand 0, single buffered']
    %10 = vsyncpa [#allocation3], 0
    %11 = vsyncpa [#allocation6], 0
    %12 = vsyncpa [#allocation9], 0
    %13 = vsyncpa [#allocation4], 0
    // Predicated region
    $region2: #{tpu_custom_call.1} parent=1 // pred_check
      _
    $region3: #{tpu_custom_call.1} parent=1 // pred_check_branch
      %15 = sbr.rel (0) target = $region5
    $region4: #{tpu_custom_call.1} parent=1 // pred_region
      %17 = vsyncadd [#allocation3], 0
      %s18 = sshll.u32 %s0, 4
      %s19 = int_to_ptr.hbm [resolvable:$true] %s18
      %s20 = sshll.u32 [#allocation2], 4
      %s21 = int_to_ptr.vmem [resolvable:$true] %s20
      %26 = dma.hbm_to_vmem [thread:$0]  %s19, 256, %s21, [#allocation3], 128, 128, 8
    $region5: #{tpu_custom_call.1} parent=1 // pred_fallthru
      _
    // Predicated region
    $region6: #{tpu_custom_call.1} parent=1 // pred_check
      _
    $region7: #{tpu_custom_call.1} parent=1 // pred_check_branch
      %28 = sbr.rel (0) target = $region9
    $region8: #{tpu_custom_call.1} parent=1 // pred_region
      %30 = vsyncadd [#allocation6], 0
      %s31 = sshll.u32 %s1, 4
      %s32 = int_to_ptr.hbm [resolvable:$true] %s31
      %s33 = sshll.u32 [#allocation5], 4
      %s34 = int_to_ptr.vmem [resolvable:$true] %s33
      %39 = dma.hbm_to_vmem [thread:$0]  %s32, 2048, %s34, [#allocation6], 128, 128, 8
    $region9: #{tpu_custom_call.1} parent=1 // pred_fallthru
      _
    // Predicated region
    $region10: #{tpu_custom_call.1} parent=1 // pred_check
      _
    $region11: #{tpu_custom_call.1} parent=1 // pred_check_branch
      %41 = sbr.rel (0) target = $region13
    $region12: #{tpu_custom_call.1} parent=1 // pred_region
      %43 = vsyncadd [#allocation6], 0
      %s45 = sshll.u32 %s2, 4
      %s46 = int_to_ptr.hbm [resolvable:$true] %s45
      %s47 = sshll.u32 [#allocation7], 4
      %s48 = int_to_ptr.vmem [resolvable:$true] %s47
      %50 = dma.hbm_to_vmem [thread:$0]  %s46, 32, %s48, [#allocation6]
    $region13: #{tpu_custom_call.1} parent=1 // pred_fallthru
      _
    // Predicated region
    $region14: #{tpu_custom_call.1} parent=1 // pred_check
      _
    $region15: #{tpu_custom_call.1} parent=1 // pred_check_branch
      %52 = sbr.rel (0) target = $region17
    $region16: #{tpu_custom_call.1} parent=1 // pred_region
      %54 = vsyncadd [#allocation9], 0
      %s55 = sshll.u32 %s3, 4
      %s56 = int_to_ptr.hbm [resolvable:$true] %s55
      %s57 = sshll.u32 [#allocation8], 4
      %s58 = int_to_ptr.vmem [resolvable:$true] %s57
      %63 = dma.hbm_to_vmem [thread:$0]  %s56, 2048, %s58, [#allocation9], 64, 64, 4
    $region17: #{tpu_custom_call.1} parent=1 // pred_fallthru
      _
    // Predicated region
    $region18: #{tpu_custom_call.1} parent=1 // pred_check
      _
    $region19: #{tpu_custom_call.1} parent=1 // pred_check_branch
      %65 = sbr.rel (0) target = $region21
    $region20: #{tpu_custom_call.1} parent=1 // pred_region
      _
    $region21: #{tpu_custom_call.1} parent=1 // pred_fallthru
      _
    // Predicated region
    $region22: #{tpu_custom_call.1} parent=1 // pred_check
      _
    $region23: #{tpu_custom_call.1} parent=1 // pred_check_branch
      %67 = sbr.rel (0) target = $region25
    $region24: #{tpu_custom_call.1} parent=1 // pred_region
      %69 = dma.done [#allocation3], 256
    $region25: #{tpu_custom_call.1} parent=1 // pred_fallthru
      _
    // Predicated region
    $region26: #{tpu_custom_call.1} parent=1 // pred_check
      _
    $region27: #{tpu_custom_call.1} parent=1 // pred_check_branch
      %71 = sbr.rel (0) target = $region29
    $region28: #{tpu_custom_call.1} parent=1 // pred_region
      %73 = dma.done [#allocation6], 2048
    $region29: #{tpu_custom_call.1} parent=1 // pred_fallthru
      _
    // Predicated region
    $region30: #{tpu_custom_call.1} parent=1 // pred_check
      _
    $region31: #{tpu_custom_call.1} parent=1 // pred_check_branch
      %75 = sbr.rel (0) target = $region33
    $region32: #{tpu_custom_call.1} parent=1 // pred_region
      %77 = dma.done [#allocation6], 32
    $region33: #{tpu_custom_call.1} parent=1 // pred_fallthru
      _
    // Predicated region
    $region34: #{tpu_custom_call.1} parent=1 // pred_check
      _
    $region35: #{tpu_custom_call.1} parent=1 // pred_check_branch
      %79 = sbr.rel (0) target = $region37
    $region36: #{tpu_custom_call.1} parent=1 // pred_region
      %81 = dma.done [#allocation9], 2048
    $region37: #{tpu_custom_call.1} parent=1 // pred_fallthru
      _
    %v82 = vld [vmem:[#allocation2] sm:$0xff]
    %v83 = vld [vmem:[#allocation2 + $0x8] sm:$0xff]
    %v84 = vpack.c.bf16 %v83, %v82
    %v85 = vld [vmem:[#allocation5] sm:$0xff]
    %v86 = vld [vmem:[#allocation5 + $0x8] sm:$0xff]
    %v87 = vld [vmem:[#allocation5 + $0x10] sm:$0xff]
    %v88 = vld [vmem:[#allocation5 + $0x18] sm:$0xff]
    %v89 = vld [vmem:[#allocation5 + $0x20] sm:$0xff]
    %v90 = vld [vmem:[#allocation5 + $0x28] sm:$0xff]
    %v91 = vld [vmem:[#allocation5 + $0x30] sm:$0xff]
    %v92 = vld [vmem:[#allocation5 + $0x38] sm:$0xff]
    %v93 = vld [vmem:[#allocation5 + $0x40] sm:$0xff]
    %v94 = vld [vmem:[#allocation5 + $0x48] sm:$0xff]
    %v95 = vld [vmem:[#allocation5 + $0x50] sm:$0xff]
    %v96 = vld [vmem:[#allocation5 + $0x58] sm:$0xff]
    %v97 = vld [vmem:[#allocation5 + $0x60] sm:$0xff]
    %v98 = vld [vmem:[#allocation5 + $0x68] sm:$0xff]
    %v99 = vld [vmem:[#allocation5 + $0x70] sm:$0xff]
    %v100 = vld [vmem:[#allocation5 + $0x78] sm:$0xff]
    %v101 = vld [vmem:[#allocation7] sm:$0x3]
    %v103 = vperm.slane %v101, 0
    %v104 = vperm.slane %v101, 1
    %v123 = vunpack.c.l.b16 %v85
    %v124 = vunpack.c.h.b16 %v85
    %v125 = vunpack.c.l.b16 %v86
    %v126 = vunpack.c.h.b16 %v86
    %v127 = vunpack.c.l.b16 %v87
    %v128 = vunpack.c.h.b16 %v87
    %v129 = vunpack.c.l.b16 %v88
    %v130 = vunpack.c.h.b16 %v88
    %v131 = vunpack.c.l.b16 %v89
    %v132 = vunpack.c.h.b16 %v89
    %v133 = vunpack.c.l.b16 %v90
    %v134 = vunpack.c.h.b16 %v90
    %v135 = vunpack.c.l.b16 %v91
    %v136 = vunpack.c.h.b16 %v91
    %v137 = vunpack.c.l.b16 %v92
    %v138 = vunpack.c.h.b16 %v92
    %v139 = vunpack.c.l.b16 %v93
    %v140 = vunpack.c.h.b16 %v93
    %v141 = vunpack.c.l.b16 %v94
    %v142 = vunpack.c.h.b16 %v94
    %v143 = vunpack.c.l.b16 %v95
    %v144 = vunpack.c.h.b16 %v95
    %v145 = vunpack.c.l.b16 %v96
    %v146 = vunpack.c.h.b16 %v96
    %v147 = vunpack.c.l.b16 %v97
    %v148 = vunpack.c.h.b16 %v97
    %v149 = vunpack.c.l.b16 %v98
    %v150 = vunpack.c.h.b16 %v98
    %v151 = vunpack.c.l.b16 %v99
    %v152 = vunpack.c.h.b16 %v99
    %v153 = vunpack.c.l.b16 %v100
    %v154 = vunpack.c.h.b16 %v100
    %v155 = vpack.c.b16 %v125, %v123
    %v156 = vpack.c.b16 %v126, %v124
    %v157 = vpack.c.b16 %v129, %v127
    %v158 = vpack.c.b16 %v130, %v128
    %v159 = vpack.c.b16 %v133, %v131
    %v160 = vpack.c.b16 %v134, %v132
    %v161 = vpack.c.b16 %v137, %v135
    %v162 = vpack.c.b16 %v138, %v136
    %v163 = vpack.c.b16 %v141, %v139
    %v164 = vpack.c.b16 %v142, %v140
    %v165 = vpack.c.b16 %v145, %v143
    %v166 = vpack.c.b16 %v146, %v144
    %v167 = vpack.c.b16 %v149, %v147
    %v168 = vpack.c.b16 %v150, %v148
    %v169 = vpack.c.b16 %v153, %v151
    %v170 = vpack.c.b16 %v154, %v152
    %187 = vmatpush.bf16.msra.mxu0 %v169
    %188 = vmatpush.bf16.msra.mxu0 %v167
    %189 = vmatpush.bf16.msra.mxu0 %v165
    %190 = vmatpush.bf16.msra.mxu0 %v163
    %191 = vmatpush.bf16.msra.mxu0 %v161
    %192 = vmatpush.bf16.msra.mxu0 %v159
    %193 = vmatpush.bf16.msra.mxu0 %v157
    %194 = vmatpush.bf16.msra.mxu0 %v155
    %195 = vmatmul.bf16.gmra.mxu0 %v84
    %v196 = vpop.f32.mrf.mxu0
    %v197 = vadd.f32 %v103, %v196
    %v198 = vpop.f32.mrf.mxu0
    %v199 = vadd.f32 %v103, %v198
    %200 = vdwg.mxu0
    %201 = vmatpush.bf16.msra.mxu0 %v170
    %202 = vmatpush.bf16.msra.mxu0 %v168
    %203 = vmatpush.bf16.msra.mxu0 %v166
    %204 = vmatpush.bf16.msra.mxu0 %v164
    %205 = vmatpush.bf16.msra.mxu0 %v162
    %206 = vmatpush.bf16.msra.mxu0 %v160
    %207 = vmatpush.bf16.msra.mxu0 %v158
    %208 = vmatpush.bf16.msra.mxu0 %v156
    %209 = vmatmul.bf16.gmra.mxu0 %v84
    %v210 = vpop.f32.mrf.mxu0
    %v211 = vadd.f32 %v104, %v210
    %v212 = vpop.f32.mrf.mxu0
    %v213 = vadd.f32 %v104, %v212
    %214 = vdwg.mxu0
    %v215 = vmax.f32 %v197, 0.0
    %v216 = vmax.f32 %v211, 0.0
    %v217 = vmax.f32 %v199, 0.0
    %v218 = vmax.f32 %v213, 0.0
    %v219 = vpack.c.bf16 %v217, %v215
    %v220 = vpack.c.bf16 %v218, %v216
    %v221 = vld [vmem:[#allocation8] sm:$0xf]
    %v222 = vld [vmem:[#allocation8 + $0x4] sm:$0xf]
    %v223 = vld [vmem:[#allocation8 + $0x8] sm:$0xf]
    %v224 = vld [vmem:[#allocation8 + $0xc] sm:$0xf]
    %v225 = vld [vmem:[#allocation8 + $0x10] sm:$0xf]
    %v226 = vld [vmem:[#allocation8 + $0x14] sm:$0xf]
    %v227 = vld [vmem:[#allocation8 + $0x18] sm:$0xf]
    %v228 = vld [vmem:[#allocation8 + $0x1c] sm:$0xf]
    %v229 = vld [vmem:[#allocation8 + $0x20] sm:$0xf]
    %v230 = vld [vmem:[#allocation8 + $0x24] sm:$0xf]
    %v231 = vld [vmem:[#allocation8 + $0x28] sm:$0xf]
    %v232 = vld [vmem:[#allocation8 + $0x2c] sm:$0xf]
    %v233 = vld [vmem:[#allocation8 + $0x30] sm:$0xf]
    %v234 = vld [vmem:[#allocation8 + $0x34] sm:$0xf]
    %v235 = vld [vmem:[#allocation8 + $0x38] sm:$0xf]
    %v236 = vld [vmem:[#allocation8 + $0x3c] sm:$0xf]
    %v237 = vld [vmem:[#allocation8 + $0x40] sm:$0xf]
    %v238 = vld [vmem:[#allocation8 + $0x44] sm:$0xf]
    %v239 = vld [vmem:[#allocation8 + $0x48] sm:$0xf]
    %v240 = vld [vmem:[#allocation8 + $0x4c] sm:$0xf]
    %v241 = vld [vmem:[#allocation8 + $0x50] sm:$0xf]
    %v242 = vld [vmem:[#allocation8 + $0x54] sm:$0xf]
    %v243 = vld [vmem:[#allocation8 + $0x58] sm:$0xf]
    %v244 = vld [vmem:[#allocation8 + $0x5c] sm:$0xf]
    %v245 = vld [vmem:[#allocation8 + $0x60] sm:$0xf]
    %v246 = vld [vmem:[#allocation8 + $0x64] sm:$0xf]
    %v247 = vld [vmem:[#allocation8 + $0x68] sm:$0xf]
    %v248 = vld [vmem:[#allocation8 + $0x6c] sm:$0xf]
    %v249 = vld [vmem:[#allocation8 + $0x70] sm:$0xf]
    %v250 = vld [vmem:[#allocation8 + $0x74] sm:$0xf]
    %v251 = vld [vmem:[#allocation8 + $0x78] sm:$0xf]
    %v252 = vld [vmem:[#allocation8 + $0x7c] sm:$0xf]
    %v253 = vld [vmem:[%s4] sm:$0x1]
    %v255 = vperm.slane %v253, 0
    %v289 = vunpack.c.l.b16 %v221
    %v290 = vunpack.c.l.b16 %v222
    %v291 = vunpack.c.l.b16 %v223
    %v292 = vunpack.c.l.b16 %v224
    %v293 = vunpack.c.l.b16 %v225
    %v294 = vunpack.c.l.b16 %v226
    %v295 = vunpack.c.l.b16 %v227
    %v296 = vunpack.c.l.b16 %v228
    %v297 = vunpack.c.l.b16 %v229
    %v298 = vunpack.c.l.b16 %v230
    %v299 = vunpack.c.l.b16 %v231
    %v300 = vunpack.c.l.b16 %v232
    %v301 = vunpack.c.l.b16 %v233
    %v302 = vunpack.c.l.b16 %v234
    %v303 = vunpack.c.l.b16 %v235
    %v304 = vunpack.c.l.b16 %v236
    %v305 = vunpack.c.l.b16 %v237
    %v306 = vunpack.c.l.b16 %v238
    %v307 = vunpack.c.l.b16 %v239
    %v308 = vunpack.c.l.b16 %v240
    %v309 = vunpack.c.l.b16 %v241
    %v310 = vunpack.c.l.b16 %v242
    %v311 = vunpack.c.l.b16 %v243
    %v312 = vunpack.c.l.b16 %v244
    %v313 = vunpack.c.l.b16 %v245
    %v314 = vunpack.c.l.b16 %v246
    %v315 = vunpack.c.l.b16 %v247
    %v316 = vunpack.c.l.b16 %v248
    %v317 = vunpack.c.l.b16 %v249
    %v318 = vunpack.c.l.b16 %v250
    %v319 = vunpack.c.l.b16 %v251
    %v320 = vunpack.c.l.b16 %v252
    %v321 = vpack.c.b16 %v290, %v289
    %v322 = vpack.c.b16 %v292, %v291
    %v323 = vpack.c.b16 %v294, %v293
    %v324 = vpack.c.b16 %v296, %v295
    %v325 = vpack.c.b16 %v298, %v297
    %v326 = vpack.c.b16 %v300, %v299
    %v327 = vpack.c.b16 %v302, %v301
    %v328 = vpack.c.b16 %v304, %v303
    %v329 = vpack.c.b16 %v306, %v305
    %v330 = vpack.c.b16 %v308, %v307
    %v331 = vpack.c.b16 %v310, %v309
    %v332 = vpack.c.b16 %v312, %v311
    %v333 = vpack.c.b16 %v314, %v313
    %v334 = vpack.c.b16 %v316, %v315
    %v335 = vpack.c.b16 %v318, %v317
    %v336 = vpack.c.b16 %v320, %v319
    %353 = vmatpush.bf16.msra.mxu0 %v328
    %354 = vmatpush.bf16.msra.mxu0 %v327
    %355 = vmatpush.bf16.msra.mxu0 %v326
    %356 = vmatpush.bf16.msra.mxu0 %v325
    %357 = vmatpush.bf16.msra.mxu0 %v324
    %358 = vmatpush.bf16.msra.mxu0 %v323
    %359 = vmatpush.bf16.msra.mxu0 %v322
    %360 = vmatpush.bf16.msra.mxu0 %v321
    %361 = vmatmul.bf16.gmra.mxu0 %v219
    %v362 = vpop.f32.mrf.mxu0
    %v363 = vadd.f32 %v255, %v362
    %v364 = vpop.f32.mrf.mxu0
    %v365 = vadd.f32 %v255, %v364
    %366 = vdwg.mxu0
    %367 = vmatpush.bf16.msra.mxu0 %v336
    %368 = vmatpush.bf16.msra.mxu0 %v335
    %369 = vmatpush.bf16.msra.mxu0 %v334
    %370 = vmatpush.bf16.msra.mxu0 %v333
    %371 = vmatpush.bf16.msra.mxu0 %v332
    %372 = vmatpush.bf16.msra.mxu0 %v331
    %373 = vmatpush.bf16.msra.mxu0 %v330
    %374 = vmatpush.bf16.msra.mxu0 %v329
    %375 = vmatmul.bf16.gmra.mxu0 %v220
    %v376 = vpop.f32.mrf.mxu0
    %v377 = vadd.f32 %v363, %v376
    %v378 = vpop.f32.mrf.mxu0
    %v379 = vadd.f32 %v365, %v378
    %380 = vdwg.mxu0
    %381 = vst [vmem:[#allocation10] sm:$0xff] %v377
    %382 = vst [vmem:[#allocation10 + $0x8] sm:$0xff] %v379
    // Predicated region
    $region38: #{tpu_custom_call.1} parent=1 // pred_check
      _
    $region39: #{tpu_custom_call.1} parent=1 // pred_check_branch
      %384 = sbr.rel (0) target = $region41
    $region40: #{tpu_custom_call.1} parent=1 // pred_region
      %386 = vsyncadd [#allocation4], 0
      %s387 = sshll.u32 [#allocation10], 4
      %s388 = int_to_ptr.vmem [resolvable:$true] %s387
      %s389 = sshll.u32 %s5, 4
      %s390 = int_to_ptr.hbm [resolvable:$true] %s389
      %395 = dma.vmem_to_hbm [thread:$0]  %s388, 256, %s390, [#allocation4], 128, 128, 8
    $region41: #{tpu_custom_call.1} parent=1 // pred_fallthru
      _
    // Predicated region
    $region42: #{tpu_custom_call.1} parent=1 // pred_check
      _
    $region43: #{tpu_custom_call.1} parent=1 // pred_check_branch
      %397 = sbr.rel (0) target = $region45
    $region44: #{tpu_custom_call.1} parent=1 // pred_region
      %399 = dma.done [#allocation4], 256
    $region45: #{tpu_custom_call.1} parent=1 // pred_fallthru
      _
    %400 = vsyncpa [#allocation3], 1
    %401 = vsyncpa [#allocation6], 1
    %402 = vsyncpa [#allocation9], 1
    %403 = vsyncpa [#allocation4], 1

</llo_original>
